<compile_context>
chip_gen: v6e
topology: v6e:2x2x1
jax: 0.10.0
libtpu: 0.0.40
codegen_flags: <defaults>
</compile_context>

<pallas_src>
import functools
import math

import jax
import jax.numpy as jnp
import numpy as np
from jax import lax
from jax.experimental import pallas as pl
from jax.experimental.pallas import tpu as pltpu

# Deterministic "parameters" (the buffers built in Sobelxy.__init__); used by the
# pure-JAX reference below.
KERNEL_X = np.array([[-1.0, 0.0, 1.0],
                     [-2.0, 0.0, 2.0],
                     [-1.0, 0.0, 1.0]], dtype=np.float32)
KERNEL_Y = np.array([[1.0, 2.0, 1.0],
                     [0.0, 0.0, 0.0],
                     [-1.0, -2.0, -1.0]], dtype=np.float32)

_LANE = 128                      # vreg lane width
_SUBLANE = 8                     # vreg sublane count
_TARGET_BLOCK_BYTES = 4 << 20    # ~4 MiB (input + output) per grid step
_VMEM_LIMIT_BYTES = 48 << 20     # safe on v5e/v6e (128 MiB) and v7x (64 MiB)


def _sobel_core(x, x_up, x_dn, m_left, m_right):
    """Separable 3x3 Sobel magnitude.

    x_up == x[i-1, j] and x_dn == x[i+1, j] with the conv2d(padding=1) zero halo
    already applied.  Horizontal neighbours are +-1 along the last (lane) axis;
    m_left / m_right zero the halo there (and kill any roll wrap-around).
    """
    lane_axis = x.ndim - 1
    L = x.shape[-1]

    s = x_up + 2.0 * x + x_dn                 # [1, 2, 1]^T  column pass (feeds Sobel-x)
    d = x_up - x_dn                           # [1, 0, -1]^T column pass (feeds Sobel-y)

    s_lm = jnp.where(m_left, pltpu.roll(s, shift=1, axis=lane_axis), 0.0)        # s[i, j-1]
    s_rp = jnp.where(m_right, pltpu.roll(s, shift=L - 1, axis=lane_axis), 0.0)   # s[i, j+1]
    d_lm = jnp.where(m_left, pltpu.roll(d, shift=1, axis=lane_axis), 0.0)        # d[i, j-1]
    d_rp = jnp.where(m_right, pltpu.roll(d, shift=L - 1, axis=lane_axis), 0.0)   # d[i, j+1]

    gx = s_rp - s_lm                          # row pass [-1, 0, 1]
    gy = d_lm + 2.0 * d + d_rp                # row pass [ 1, 2, 1]
    return jnp.abs(gx) + jnp.abs(gy)


def _sobel_packed_kernel(x_ref, o_ref, *, h, w):
    """Block (nb_planes, h*w): planes along sublanes, each plane flattened on lanes."""
    nb, L = x_ref.shape                        # L == h * w
    x = x_ref[...].astype(jnp.float32)         # per-block cast in VMEM (VPU slack)

    # Hoisted border masks (built once per block, reused by every shifted operand).
    lane = lax.broadcasted_iota(jnp.int32, (nb, L), 1)
    col = jnp.broadcast_to(
        lax.broadcasted_iota(jnp.int32, (1, L), 1) % w, (nb, L))  # column inside plane
    m_up = lane >= w                            # a row above exists
    m_dn = lane < L - w                         # a row below exists
    m_left = col >= 1                           # a column to the left exists
    m_right = col <= w - 2                      # a column to the right exists

    # Vertical neighbours are w lanes apart in the flattened plane; roll wrap-around
    # and plane seams land exactly on the masked (zero-halo) positions.
    x_up = jnp.where(m_up, pltpu.roll(x, shift=w, axis=1), 0.0)       # x[i-1, j]
    x_dn = jnp.where(m_dn, pltpu.roll(x, shift=L - w, axis=1), 0.0)   # x[i+1, j]

    o_ref[...] = _sobel_core(x, x_up, x_dn, m_left, m_right).astype(o_ref.dtype)


def _sobel_rows_kernel(x_ref, o_ref, *, h):
    """Block (nb_planes*h, W): plane rows stacked along sublanes, W (>=128) on lanes."""
    R, W = x_ref.shape
    x = x_ref[...].astype(jnp.float32)

    # Hoisted border masks: per-plane row index via a tiny (R, 1) rem, broadcast once.
    row = jnp.broadcast_to(
        lax.broadcasted_iota(jnp.int32, (R, 1), 0) % h, (R, W))
    col = lax.broadcasted_iota(jnp.int32, (R, W), 1)
    m_up = row >= 1
    m_dn = row <= h - 2
    m_left = col >= 1
    m_right = col <= W - 2

    # Vertical neighbours are +-1 sublane; wrap-around and plane seams land on
    # row % h == 0 / h-1 and are masked to the zero halo.
    x_up = jnp.where(m_up, pltpu.roll(x, shift=1, axis=0), 0.0)       # x[i-1, j]
    x_dn = jnp.where(m_dn, pltpu.roll(x, shift=R - 1, axis=0), 0.0)   # x[i+1, j]

    o_ref[...] = _sobel_core(x, x_up, x_dn, m_left, m_right).astype(o_ref.dtype)


def _plan_planes_per_block(n_planes, bytes_per_plane, quantum):
    """Planes per grid step.

    Multiple of `quantum` (sublane alignment of the block's second-minor dim) or all
    planes; ~_TARGET_BLOCK_BYTES per block; and at least 2 grid steps when there is
    enough work so both v7x TensorCores get blocks.  Ragged last blocks are fine.
    """
    if n_planes <= quantum:
        return n_planes
    by_size = max(1, _TARGET_BLOCK_BYTES // max(1, bytes_per_plane))
    by_split = pl.cdiv(n_planes, 2)            # keep >= 2 grid steps
    nb = min(by_size, by_split)
    nb = max(quantum, (nb // quantum) * quantum)
    return min(nb, (n_planes // quantum) * quantum)


def _sobel_call(kernel, x2d, block_rows):
    rows, cols = x2d.shape
    grid = (pl.cdiv(rows, block_rows),)
    return pl.pallas_call(
        kernel,
        out_shape=jax.ShapeDtypeStruct((rows, cols), jnp.float32),
        grid_spec=pltpu.PrefetchScalarGridSpec(
            num_scalar_prefetch=0,
            grid=grid,
            in_specs=[pl.BlockSpec((block_rows, cols), lambda i: (i, 0))],
            out_specs=pl.BlockSpec((block_rows, cols), lambda i: (i, 0)),
        ),
        compiler_params=pltpu.CompilerParams(
            dimension_semantics=("parallel",),
            vmem_limit_bytes=_VMEM_LIMIT_BYTES,
        ),
        cost_estimate=pl.CostEstimate(
            flops=20 * rows * cols,
            transcendentals=0,
            bytes_accessed=rows * cols * (x2d.dtype.itemsize + 4),
        ),
    )(x2d)


@jax.jit
def sobelxy(x):
    """x: (B, C, H, W), any real dtype -> (B, C, 1, H, W) float32 (matches the module)."""
    B, C, H, W = x.shape
    N = B * C
    plane_bytes = H * W * (x.dtype.itemsize + 4)   # native input + f32 output

    if W < _LANE:
        # Lane-dense small-W path: flatten each plane along lanes (free reshape).
        nb = _plan_planes_per_block(N, plane_bytes, _SUBLANE)
        kern = functools.partial(_sobel_packed_kernel, h=H, w=W)
        out = _sobel_call(kern, x.reshape(N, H * W), nb)
    else:
        # W already lane-dense: stack plane rows along sublanes (free reshape).
        # TODO(synk): H-chunked tiling with a 2-row halo for very large single planes.
        quantum = _SUBLANE // math.gcd(H, _SUBLANE)
        nb = _plan_planes_per_block(N, plane_bytes, quantum)
        kern = functools.partial(_sobel_rows_kernel, h=H)
        out = _sobel_call(kern, x.reshape(N * H, W), nb * H)

    # PyTorch forward stacks per-channel (1,1,H,W) maps -> (B, C, 1, H, W).
    return out.reshape(B, C, 1, H, W)


def _sobelxy_ref(x):
    """Pure-JAX reference of the PyTorch forward."""
    x = x.astype(jnp.float32)
    B, C, H, W = x.shape
    xp = jnp.pad(x, ((0, 0), (0, 0), (1, 1), (1, 1)))
    gx = jnp.zeros((B, C, H, W), jnp.float32)
    gy = jnp.zeros((B, C, H, W), jnp.float32)
    for ky in range(3):
        for kx in range(3):
            win = xp[:, :, ky:ky + H, kx:kx + W]
            gx = gx + float(KERNEL_X[ky, kx]) * win
            gy = gy + float(KERNEL_Y[ky, kx]) * win
    return (jnp.abs(gx) + jnp.abs(gy)).reshape(B, C, 1, H, W)


if __name__ == "__main__":
    key = jax.random.PRNGKey(0)
    x = jax.random.normal(key, (2, 4, 16, 16), dtype=jnp.float32)

    out = sobelxy(x)
    jax.block_until_ready(out)
    assert out.shape == (2, 4, 1, 16, 16), out.shape
    np.testing.assert_allclose(np.asarray(out), np.asarray(_sobelxy_ref(x)),
                               rtol=1e-5, atol=1e-5)

    # Also exercise the lane-dense W>=128 (rows) path and a ragged packed grid.
    for i, shape in enumerate([(2, 3, 16, 128), (3, 3, 8, 16)]):
        x2 = jax.random.normal(jax.random.PRNGKey(1 + i), shape, dtype=jnp.float32)
        o2 = sobelxy(x2)
        jax.block_until_ready(o2)
        np.testing.assert_allclose(np.asarray(o2), np.asarray(_sobelxy_ref(x2)),
                                   rtol=1e-5, atol=1e-5)

    print("KERNEL_OK")
</pallas_src>

<mosaic_0001>
module attributes {stable_mosaic.version = 11 : i64} {
  func.func @_sobel_packed_kernel(%arg0: i32, %arg1: memref<8x256xf32, #tpu.memory_space<vmem>>, %arg2: memref<8x256xf32, #tpu.memory_space<vmem>>) attributes {dimension_semantics = [#tpu.dimension_semantics<parallel>], iteration_bounds = array<i64: 1>, scalar_prefetch = 0 : i64, scratch_operands = 0 : i64, tpu.core_type = #tpu.core_type<tc>, window_params = [{transform_indices = @transform_0, window_bounds = array<i64: 8, 256>}, {transform_indices = @transform_1, window_bounds = array<i64: 8, 256>}]} {
    %c0 = arith.constant 0 : index
    %c0_0 = arith.constant 0 : index
    %0 = vector.load %arg1[%c0, %c0_0] : memref<8x256xf32, #tpu.memory_space<vmem>>, vector<8x256xf32>
    %1 = tpu.iota {dimensions = array<i32: 1>} : vector<8x256xi32>
    %2 = tpu.iota {dimensions = array<i32: 1>} : vector<1x256xi32>
    %c16_i32 = arith.constant 16 : i32
    %c0_i32 = arith.constant 0 : i32
    %3 = arith.cmpi eq, %c16_i32, %c0_i32 : i32
    %c1_i32 = arith.constant 1 : i32
    %4 = arith.select %3, %c1_i32, %c16_i32 : i32
    %5 = vector.broadcast %4 : i32 to vector<1x256xi32>
    %6 = arith.remsi %2, %5 : vector<1x256xi32>
    %c0_i32_1 = arith.constant 0 : i32
    %7 = vector.broadcast %c0_i32_1 : i32 to vector<1x256xi32>
    %8 = arith.cmpi ne, %6, %7 : vector<1x256xi32>
    %c0_i32_2 = arith.constant 0 : i32
    %9 = vector.broadcast %c0_i32_2 : i32 to vector<1x256xi32>
    %10 = arith.cmpi slt, %6, %9 : vector<1x256xi32>
    %c0_i32_3 = arith.constant 0 : i32
    %11 = arith.cmpi slt, %4, %c0_i32_3 : i32
    %12 = vector.broadcast %11 : i1 to vector<1x256xi1>
    %13 = vector.broadcast %12 : vector<1x256xi1> to vector<1x256xi1>
    %14 = arith.xori %10, %13 : vector<1x256xi1>
    %15 = arith.andi %14, %8 : vector<1x256xi1>
    %16 = vector.broadcast %4 : i32 to vector<1x256xi32>
    %17 = arith.addi %6, %16 : vector<1x256xi32>
    %18 = arith.select %15, %17, %6 : vector<1x256xi1>, vector<1x256xi32>
    %19 = vector.shape_cast %18 : vector<1x256xi32> to vector<1x256xi32>
    %20 = vector.broadcast %19 : vector<1x256xi32> to vector<8x256xi32>
    %c16_i32_4 = arith.constant 16 : i32
    %21 = vector.broadcast %c16_i32_4 : i32 to vector<8x256xi32>
    %22 = arith.cmpi sge, %1, %21 : vector<8x256xi32>
    %c240_i32 = arith.constant 240 : i32
    %23 = vector.broadcast %c240_i32 : i32 to vector<8x256xi32>
    %24 = arith.cmpi slt, %1, %23 : vector<8x256xi32>
    %c1_i32_5 = arith.constant 1 : i32
    %25 = vector.broadcast %c1_i32_5 : i32 to vector<8x256xi32>
    %26 = arith.cmpi sge, %20, %25 : vector<8x256xi32>
    %c14_i32 = arith.constant 14 : i32
    %27 = vector.broadcast %c14_i32 : i32 to vector<8x256xi32>
    %28 = arith.cmpi sle, %20, %27 : vector<8x256xi32>
    %c16_i32_6 = arith.constant 16 : i32
    %29 = tpu.dynamic_rotate %0 by %c16_i32_6 dim 1 : vector<8x256xf32>, i32 -> vector<8x256xf32>
    %cst = arith.constant 0.000000e+00 : f32
    %30 = vector.broadcast %cst : f32 to vector<8x256xf32>
    %31 = arith.select %22, %29, %30 : vector<8x256xi1>, vector<8x256xf32>
    %c240_i32_7 = arith.constant 240 : i32
    %32 = tpu.dynamic_rotate %0 by %c240_i32_7 dim 1 : vector<8x256xf32>, i32 -> vector<8x256xf32>
    %cst_8 = arith.constant 0.000000e+00 : f32
    %33 = vector.broadcast %cst_8 : f32 to vector<8x256xf32>
    %34 = arith.select %24, %32, %33 : vector<8x256xi1>, vector<8x256xf32>
    %cst_9 = arith.constant 2.000000e+00 : f32
    %35 = vector.broadcast %cst_9 : f32 to vector<8x256xf32>
    %36 = arith.mulf %35, %0 : vector<8x256xf32>
    %37 = arith.addf %31, %36 : vector<8x256xf32>
    %38 = arith.addf %37, %34 : vector<8x256xf32>
    %39 = arith.subf %31, %34 : vector<8x256xf32>
    %c1_i32_10 = arith.constant 1 : i32
    %40 = tpu.dynamic_rotate %38 by %c1_i32_10 dim 1 : vector<8x256xf32>, i32 -> vector<8x256xf32>
    %cst_11 = arith.constant 0.000000e+00 : f32
    %41 = vector.broadcast %cst_11 : f32 to vector<8x256xf32>
    %42 = arith.select %26, %40, %41 : vector<8x256xi1>, vector<8x256xf32>
    %c255_i32 = arith.constant 255 : i32
    %43 = tpu.dynamic_rotate %38 by %c255_i32 dim 1 : vector<8x256xf32>, i32 -> vector<8x256xf32>
    %cst_12 = arith.constant 0.000000e+00 : f32
    %44 = vector.broadcast %cst_12 : f32 to vector<8x256xf32>
    %45 = arith.select %28, %43, %44 : vector<8x256xi1>, vector<8x256xf32>
    %c1_i32_13 = arith.constant 1 : i32
    %46 = tpu.dynamic_rotate %39 by %c1_i32_13 dim 1 : vector<8x256xf32>, i32 -> vector<8x256xf32>
    %cst_14 = arith.constant 0.000000e+00 : f32
    %47 = vector.broadcast %cst_14 : f32 to vector<8x256xf32>
    %48 = arith.select %26, %46, %47 : vector<8x256xi1>, vector<8x256xf32>
    %c255_i32_15 = arith.constant 255 : i32
    %49 = tpu.dynamic_rotate %39 by %c255_i32_15 dim 1 : vector<8x256xf32>, i32 -> vector<8x256xf32>
    %cst_16 = arith.constant 0.000000e+00 : f32
    %50 = vector.broadcast %cst_16 : f32 to vector<8x256xf32>
    %51 = arith.select %28, %49, %50 : vector<8x256xi1>, vector<8x256xf32>
    %52 = arith.subf %45, %42 : vector<8x256xf32>
    %cst_17 = arith.constant 2.000000e+00 : f32
    %53 = vector.broadcast %cst_17 : f32 to vector<8x256xf32>
    %54 = arith.mulf %53, %39 : vector<8x256xf32>
    %55 = arith.addf %48, %54 : vector<8x256xf32>
    %56 = arith.addf %55, %51 : vector<8x256xf32>
    %57 = math.absf %52 : vector<8x256xf32>
    %58 = math.absf %56 : vector<8x256xf32>
    %59 = arith.addf %57, %58 : vector<8x256xf32>
    %c0_18 = arith.constant 0 : index
    %c0_19 = arith.constant 0 : index
    %60 = vector.load %arg2[%c0_18, %c0_19] : memref<8x256xf32, #tpu.memory_space<vmem>>, vector<8x256xf32>
    tpu.vector_store %arg2[%c0_18, %c0_19], %59 {strides = array<i32>} : memref<8x256xf32, #tpu.memory_space<vmem>>, vector<8x256xf32>,
    return
  }
  func.func @transform_0(%arg0: i32) -> (i32, i32) {
    %c0_i32 = arith.constant 0 : i32
    %c0_i32_0 = arith.constant 0 : i32
    return %arg0, %c0_i32 : i32, i32
  }
  func.func @transform_1(%arg0: i32) -> (i32, i32) {
    %c0_i32 = arith.constant 0 : i32
    %c0_i32_0 = arith.constant 0 : i32
    return %arg0, %c0_i32 : i32, i32
  }
}

</mosaic_0001>

<llo_original>
// kernel: sobelxy.1
$region0: #{sobelxy.1}
  #allocation0 [shape = 'u32[]', space=smem, size = 0x4, offset = 0x4, fixed_abs, tag = 'smem constant byte address 0x4 - core index']
  #allocation1 [shape = 'u32[144,128]{1,0:T(1,128)}', space=vmem, size = 0x12000, scoped, tag = 'internal scratch']
  %s0 = inlined_call_operand.vmem [shape: f32[8,256], index: 0, kind: input, shape index: {}]
  %s1 = inlined_call_operand.vmem [shape: f32[8,256], index: 1, kind: output, shape index: {}]
  %s2 = sld [smem:[#allocation0]]
  $region14: #{sobelxy.1} parent=0
    _
  %s4 = ssub.s32 1, %s2
  %s5 = scalar_select 0, %s4, %s2
  // Predicated region
  $region2: #{sobelxy.1} parent=0 // pred_check
    _
  $region3: #{sobelxy.1} parent=0 // pred_check_branch
    %7 = sbr.rel (0) target = $region5
  $region4: #{sobelxy.1} parent=0 // pred_region
    _
  $region5: #{sobelxy.1} parent=0 // pred_fallthru
    _
  %v8 = vld [vmem:[%s0] sm:$0xff]
  %v9 = vld [vmem:[%s0 + $0x8] sm:$0xff]
  %v10 = vlaneseq
  %v11 = vand.u32 %v10, 127
  %v12 = vadd.s32 %v11, 128
  %vm13 = vcmp.lt.s32.totalorder %v11, 0
  %v14 = vsub.s32 0, %v11
  %v15 = vsel %vm13, %v14, %v11
  %v16 = vshrl.u32 %v15, 4
  %v17 = vand.u32 %v15, 15
  %v18 = vsub.s32 0, %v17
  %v19 = vsel %vm13, %v18, %v17
  %vm20 = vcmp.lt.s32.totalorder %v12, 0
  %v21 = vsub.s32 0, %v12
  %v22 = vsel %vm20, %v21, %v12
  %v23 = vshrl.u32 %v22, 4
  %v24 = vand.u32 %v22, 15
  %v25 = vsub.s32 0, %v24
  %v26 = vsel %vm20, %v25, %v24
  %vm27 = vcmp.ne.s32.totalorder %v19, 0
  %vm28 = vcmp.ne.s32.totalorder %v26, 0
  %vm29 = vcmp.lt.s32.totalorder %v19, 0
  %vm30 = vcmp.lt.s32.totalorder %v26, 0
  %vm31 = vmand %vm29, %vm27
  %vm32 = vmand %vm30, %vm28
  %v33 = vadd.s32 %v19, 16
  %v34 = vadd.s32 %v26, 16
  %v35 = vsel %vm31, %v33, %v19
  %v36 = vsel %vm32, %v34, %v26
  %vm37 = vcmp.ge.s32.totalorder %v11, 16
  %vm38 = vcmp.ge.s32.totalorder %v12, 16
  %vm39 = vcmp.lt.s32.totalorder %v11, 240
  %vm40 = vcmp.lt.s32.totalorder %v12, 240
  %vm41 = vcmp.ge.s32.totalorder %v35, 1
  %vm42 = vcmp.ge.s32.totalorder %v36, 1
  %vm43 = vcmp.le.s32.totalorder %v35, 14
  %vm44 = vcmp.le.s32.totalorder %v36, 14
  %45 = vrot.lane.b32.xlu0 %v8, 16
  %v46 = vpop.permute.xlu0 %45
  %47 = vrot.lane.b32.xlu0 %v9, 16
  %v48 = vpop.permute.xlu0 %47
  %vm49 = vcmp.lt.s32.totalorder %v11, 16
  %v50 = vsel %vm49, %v46, %v48
  %v51 = vsel %vm49, %v48, %v46
  %v52 = vsel %vm37, %v51, 0.0
  %v53 = vsel %vm38, %v50, 0.0
  %54 = vrot.lane.b32.xlu0 %v8, 112
  %v55 = vpop.permute.xlu0 %54
  %56 = vrot.lane.b32.xlu0 %v9, 112
  %v57 = vpop.permute.xlu0 %56
  %vm58 = vcmp.lt.s32.totalorder %v11, 112
  %v59 = vsel %vm58, %v55, %v57
  %v60 = vsel %vm58, %v57, %v55
  %v61 = vsel %vm39, %v59, 0.0
  %v62 = vsel %vm40, %v60, 0.0
  %v63 = vmul.f32 %v8, 2.0
  %v64 = vmul.f32 %v9, 2.0
  %v65 = vadd.f32 %v52, %v63
  %v66 = vadd.f32 %v53, %v64
  %v67 = vadd.f32 %v65, %v61
  %v68 = vadd.f32 %v66, %v62
  %v69 = vsub.f32 %v52, %v61
  %v70 = vsub.f32 %v53, %v62
  %71 = vrot.lane.b32.xlu0 %v67, 1
  %v72 = vpop.permute.xlu0 %71
  %73 = vrot.lane.b32.xlu0 %v68, 1
  %v74 = vpop.permute.xlu0 %73
  %vm75 = vcmp.lt.s32.totalorder %v11, 1
  %v76 = vsel %vm75, %v72, %v74
  %v77 = vsel %vm75, %v74, %v72
  %v78 = vsel %vm41, %v77, 0.0
  %v79 = vsel %vm42, %v76, 0.0
  %80 = vrot.lane.b32.xlu0 %v67, 127
  %v81 = vpop.permute.xlu0 %80
  %82 = vrot.lane.b32.xlu0 %v68, 127
  %v83 = vpop.permute.xlu0 %82
  %vm84 = vcmp.lt.s32.totalorder %v11, 127
  %v85 = vsel %vm84, %v81, %v83
  %v86 = vsel %vm84, %v83, %v81
  %v87 = vsel %vm43, %v85, 0.0
  %v88 = vsel %vm44, %v86, 0.0
  %89 = vrot.lane.b32.xlu0 %v69, 1
  %v90 = vpop.permute.xlu0 %89
  %91 = vrot.lane.b32.xlu0 %v70, 1
  %v92 = vpop.permute.xlu0 %91
  %v93 = vsel %vm75, %v90, %v92
  %v94 = vsel %vm75, %v92, %v90
  %v95 = vsel %vm41, %v94, 0.0
  %v96 = vsel %vm42, %v93, 0.0
  %97 = vrot.lane.b32.xlu0 %v69, 127
  %v98 = vpop.permute.xlu0 %97
  %99 = vrot.lane.b32.xlu0 %v70, 127
  %v100 = vpop.permute.xlu0 %99
  %v101 = vsel %vm84, %v98, %v100
  %v102 = vsel %vm84, %v100, %v98
  %v103 = vsel %vm43, %v101, 0.0
  %v104 = vsel %vm44, %v102, 0.0
  %v105 = vsub.f32 %v87, %v78
  %v106 = vsub.f32 %v88, %v79
  %v107 = vmul.f32 %v69, 2.0
  %v108 = vmul.f32 %v70, 2.0
  %v109 = vadd.f32 %v95, %v107
  %v110 = vadd.f32 %v96, %v108
  %v111 = vadd.f32 %v109, %v103
  %v112 = vadd.f32 %v110, %v104
  %v113 = vand.u32 2147483647, %v105
  %v114 = vand.u32 2147483647, %v106
  %v115 = vand.u32 2147483647, %v111
  %v116 = vand.u32 2147483647, %v112
  %v117 = vadd.f32 %v113, %v115
  %v118 = vadd.f32 %v114, %v116
  %119 = vst [vmem:[%s1] sm:$0xff] %v117
  %120 = vst [vmem:[%s1 + $0x8] sm:$0xff] %v118
  // Predicated region
  $region6: #{sobelxy.1} parent=0 // pred_check
    _
  $region7: #{sobelxy.1} parent=0 // pred_check_branch
    %122 = sbr.rel (0) target = $region9
  $region8: #{sobelxy.1} parent=0 // pred_region
    _
  $region9: #{sobelxy.1} parent=0 // pred_fallthru
    _
  // Predicated region
  $region10: #{sobelxy.1} parent=0 // pred_check
    _
  $region11: #{sobelxy.1} parent=0 // pred_check_branch
    %124 = sbr.rel (0) target = $region13
  $region12: #{sobelxy.1} parent=0 // pred_region
    _
  $region13: #{sobelxy.1} parent=0 // pred_fallthru
    _

</llo_original>
